<compile_context>
chip_gen: v7x
topology: tpu7x:2x2x1
jax: 0.10.0
libtpu: 0.0.40
codegen_flags: <defaults>
</compile_context>

<pallas_src>
import jax
import jax.numpy as jnp
from jax import lax
from jax.experimental import pallas as pl
from jax.experimental.pallas import tpu as pltpu


def _round_up(x, m):
    return ((x + m - 1) // m) * m


def _cdiv(a, b):
    return -(-a // b)


def _tpu_vmem_bytes():
    """Physical per-core VMEM (128 MiB v5e/v6e, 64 MiB v7x); safe fallback."""
    try:
        v = getattr(pltpu.get_tpu_info(), "vmem_capacity_bytes", None)
        if v:
            return int(v)
    except Exception:
        pass
    return 64 * 1024 * 1024


def _pick_tile(batch, two_d, *, fused, tb=None):
    """Pick the batch tile TB and vmem_limit_bytes for the pallas_call.

    Generation-aware: sizes the input budget from physical VMEM, accounts for
    the p/q temporaries the compiler materializes before the reduction, and on
    the 64-MiB (2-TensorCore, v7x) parts shapes the grid to an even number of
    steps so both cores get work.  Single-TC parts (v5e/v6e) keep the largest
    tile that fits — extra steps there are pure serial-loop overhead.
    """
    phys = _tpu_vmem_bytes()
    multi_tc = phys <= 80 * 1024 * 1024          # 64-MiB/TC part (v7x) has 2 TCs
    budget = (phys * 3) // 8                     # ~48 MiB v5e/v6e, ~24 MiB v7x
    dp = two_d // 2

    if fused:
        # subj + obj single-buffered VMEM scratch + p/q/product temporaries.
        per_row = (2 * two_d + 3 * dp) * 4
    else:
        # 2 double-buffered auto-pipelined input streams + p/q temporaries.
        per_row = (2 * 2 * two_d + 3 * dp) * 4

    if tb is None:
        tb = max(128, ((budget // per_row) // 128) * 128)
        tb = min(tb, 2048)
        if multi_tc and batch > 128:
            # v7x: >= 2 (even) grid steps so both TensorCores get work.
            steps = max(2, _cdiv(batch, tb))
            if steps % 2:
                steps += 1
            tb = min(tb, max(128, _round_up(_cdiv(batch, steps), 128)))
    else:
        tb = max(128, _round_up(int(tb), 128))

    need = per_row * tb + 4 * two_d * 4 + 4 * tb * 4 + (1 << 20)
    cap = (96 << 20) if phys >= (100 << 20) else (40 << 20)
    vmem_limit = int(min(cap, max(16 << 20, 2 * need)))
    return tb, vmem_limit


def _score_tile(subj, obj, w_row):
    """ComplEx score of a (TB, 2*Dp) [re|im] tile -> (TB, 1) f32.

    Refactored:  sum_d  w0*(s_r*o_r + s_i*o_i) + w1*(s_r*o_i - s_i*o_r).
    Reduction + w scaling are done in f32 on the VPU/XLU (the kernel is
    HBM-bound, so the compute unit is irrelevant and this keeps full f32
    accuracy vs. the reference — no default-precision MXU passes).
    """
    dp = w_row.shape[-1] // 2
    s_r, s_i = subj[:, :dp], subj[:, dp:]
    o_r, o_i = obj[:, :dp], obj[:, dp:]
    w0, w1 = w_row[:, :dp], w_row[:, dp:]
    p = s_r * o_r + s_i * o_i
    q = s_r * o_i - s_i * o_r
    return jnp.sum(p * w0 + q * w1, axis=1, keepdims=True)


def _gathered_rows_kernel(subj_ref, obj_ref, w_ref, out_ref):
    # subj/obj: (TB, 2*Dp) gathered rows, w: (1, 2*Dp), out: (TB, 1).
    out_ref[...] = _score_tile(
        subj_ref[...].astype(jnp.float32),
        obj_ref[...].astype(jnp.float32),
        w_ref[...].astype(jnp.float32),
    ).astype(out_ref.dtype)


def _fused_gather_kernel(s_idx_ref, o_idx_ref,   # SMEM (Bp,) scalar-prefetch
                         table_ref,              # HBM (N, 2*Dp), memory_space=ANY
                         w_ref,                  # VMEM (1, 2*Dp)
                         out_ref,                # VMEM (TB, 1)
                         subj_buf, obj_buf,      # VMEM (TB, 2*Dp) scratch
                         sem):                   # DMA semaphores (2,)
    tb = subj_buf.shape[0]
    base = pl.program_id(0) * tb

    # Gather this tile's subject/object rows straight from HBM into VMEM: one
    # row-DMA per entity, all outstanding, one completion semaphore per stream.
    # Each grid step is self-contained (issue -> wait -> compute), so
    # "parallel" megacore sharding stays race-free (per-core scratch/sems); the
    # kernel is DMA-bound, so the lost cross-step overlap only costs the small
    # compute tail.
    def issue(r, carry):
        s = s_idx_ref[base + r]
        o = o_idx_ref[base + r]
        pltpu.make_async_copy(table_ref.at[pl.ds(s, 1), :],
                              subj_buf.at[pl.ds(r, 1), :], sem.at[0]).start()
        pltpu.make_async_copy(table_ref.at[pl.ds(o, 1), :],
                              obj_buf.at[pl.ds(r, 1), :], sem.at[1]).start()
        return carry

    lax.fori_loop(0, tb, issue, 0)

    # Every row copy of a stream signals the same DMA semaphore by its byte
    # count, so a single wait sized as the full slab covers all of them
    # (the src ref of the wait descriptor is unused).
    pltpu.make_async_copy(subj_buf, subj_buf, sem.at[0]).wait()
    pltpu.make_async_copy(obj_buf, obj_buf, sem.at[1]).wait()

    out_ref[...] = _score_tile(
        subj_buf[...].astype(jnp.float32),
        obj_buf[...].astype(jnp.float32),
        w_ref[...].astype(jnp.float32),
    ).astype(out_ref.dtype)


def build_complex_table(emb_re, emb_im, w):
    """Merged, padded gather table (N, 2*Dp) and weight row (1, 2*Dp).

    Build this ONCE per parameter update and reuse it across forward calls —
    this hoists the concat/pad HBM copy out of the per-call path.
    """
    _, dim = emb_re.shape
    dp = _round_up(dim, 8)
    emb_re = emb_re.astype(jnp.float32)
    emb_im = emb_im.astype(jnp.float32)
    w = w.astype(jnp.float32)
    if dp != dim:
        pad = ((0, 0), (0, dp - dim))        # zero pad -> contributes 0 to scores
        emb_re = jnp.pad(emb_re, pad)
        emb_im = jnp.pad(emb_im, pad)
        w = jnp.pad(w, pad)
    table = jnp.concatenate([emb_re, emb_im], axis=1)   # (N, 2*Dp), rows [re | im]
    w_row = w.reshape(1, 2 * dp)                        # (1, 2*Dp) = [w0 | w1]
    # TODO(synk): optional bf16 table (with Dp rounded to 16) would roughly
    # halve HBM bytes on this mem-bound op; kept f32 for parity with the
    # PyTorch reference.
    return table, w_row


def complex_vector_forward(idxs, table, w_row, *, tb=None, fused=None):
    """Pallas implementation of ComplexVector.forward.

    idxs:  int array [..., 2]   (subject index at [...,0], object at [...,1])
    table: (N, 2*Dp) merged [re|im] table from build_complex_table
    w_row: (1, 2*Dp) weight row from build_complex_table
    returns float32 [...]

    NOTE: indices are assumed to be in range (torch.nn.Embedding would raise on
    out-of-range indices; the XLA gather path clamps silently).
    """
    batch_shape = idxs.shape[:-1]
    flat = idxs.reshape(-1, 2).astype(jnp.int32)
    B = flat.shape[0]
    if table.dtype != jnp.float32:
        table = table.astype(jnp.float32)
    two_d = table.shape[1]

    if fused is None:
        # Per-row DMA gather pays off once a table row is >= ~1 KiB; below that
        # it is descriptor-bound, so let XLA do the (contiguous) row gather.
        fused = two_d * table.dtype.itemsize >= 1024

    tb, vmem_limit = _pick_tile(B, two_d, fused=fused, tb=tb)
    Bp = _round_up(B, tb)
    grid = (Bp // tb,)

    if fused:
        # Fused gather: indices scalar-prefetched to SMEM, merged table stays
        # in HBM, rows are DMA'd in-kernel.  Padded index slots point at row 0
        # (valid); their scores are sliced off below.
        s_idx = jnp.pad(flat[:, 0], (0, Bp - B))
        o_idx = jnp.pad(flat[:, 1], (0, Bp - B))
        out = pl.pallas_call(
            _fused_gather_kernel,
            out_shape=jax.ShapeDtypeStruct((Bp, 1), jnp.float32),
            grid_spec=pltpu.PrefetchScalarGridSpec(
                num_scalar_prefetch=2,
                grid=grid,
                in_specs=[pl.BlockSpec(memory_space=pl.ANY),
                          pl.BlockSpec((1, two_d), lambda i, s, o: (0, 0))],
                out_specs=pl.BlockSpec((tb, 1), lambda i, s, o: (i, 0)),
                scratch_shapes=[pltpu.VMEM((tb, two_d), jnp.float32),
                                pltpu.VMEM((tb, two_d), jnp.float32),
                                pltpu.SemaphoreType.DMA((2,))],
            ),
            compiler_params=pltpu.CompilerParams(
                dimension_semantics=("parallel",),
                vmem_limit_bytes=vmem_limit),
        )(s_idx, o_idx, table, w_row)
    else:
        # Small-dim fallback: contiguous XLA row gather from the untransposed
        # merged table, auto-pipelined (TB, 2*Dp) blocks.  Zero-padded rows
        # score 0 and are sliced off.
        subj = table[flat[:, 0]]
        obj = table[flat[:, 1]]
        if Bp != B:
            pad = ((0, Bp - B), (0, 0))
            subj = jnp.pad(subj, pad)
            obj = jnp.pad(obj, pad)
        out = pl.pallas_call(
            _gathered_rows_kernel,
            out_shape=jax.ShapeDtypeStruct((Bp, 1), jnp.float32),
            grid_spec=pltpu.PrefetchScalarGridSpec(
                num_scalar_prefetch=0,
                grid=grid,
                in_specs=[pl.BlockSpec((tb, two_d), lambda i: (i, 0)),
                          pl.BlockSpec((tb, two_d), lambda i: (i, 0)),
                          pl.BlockSpec((1, two_d), lambda i: (0, 0))],
                out_specs=pl.BlockSpec((tb, 1), lambda i: (i, 0)),
            ),
            compiler_params=pltpu.CompilerParams(
                dimension_semantics=("parallel",),
                vmem_limit_bytes=vmem_limit),
        )(subj, obj, w_row)

    return out[:B, 0].reshape(batch_shape)


def complex_vector_reference(idxs, emb_re, emb_im, w):
    """Pure-JAX reference mirroring the PyTorch forward exactly."""
    entities_re = emb_re[idxs]            # [..., 2, D]
    entities_im = emb_im[idxs]
    s_r, s_i = entities_re[..., 0, :], entities_im[..., 0, :]
    o_r, o_i = entities_re[..., 1, :], entities_im[..., 1, :]
    return ((s_r * w[0] * o_r).sum(-1)
            + (s_i * w[0] * o_i).sum(-1)
            + (s_r * w[1] * o_i).sum(-1)
            - (s_i * w[1] * o_r).sum(-1))


if __name__ == "__main__":
    keys = jax.random.split(jax.random.PRNGKey(0), 8)

    # --- Case 1: small dim (not a multiple of 8) -> XLA row-gather path.
    #     B = 200 with TB = 128 -> 2-step grid, dim padding and batch padding.
    num_entity, dim = 32, 20
    emb_re = jax.random.normal(keys[0], (num_entity, dim), dtype=jnp.float32)
    emb_im = jax.random.normal(keys[1], (num_entity, dim), dtype=jnp.float32)
    w = jax.random.normal(keys[2], (2, dim), dtype=jnp.float32)
    idxs = jax.random.randint(keys[3], (10, 20, 2), 0, num_entity, dtype=jnp.int32)

    table, w_row = build_complex_table(emb_re, emb_im, w)   # hoisted: once per param update
    out = jax.block_until_ready(complex_vector_forward(idxs, table, w_row, tb=128))
    ref = complex_vector_reference(idxs, emb_re, emb_im, w)
    assert out.shape == ref.shape == (10, 20)
    assert jnp.allclose(out, ref, atol=1e-3, rtol=1e-3), (out, ref)

    # --- Case 2: dim = 128 -> fused in-kernel gather (scalar-prefetched
    #     indices + per-row DMAs), forced TB = 128 so the grid has 3 steps.
    num_entity2, dim2 = 64, 128
    emb_re2 = jax.random.normal(keys[4], (num_entity2, dim2), dtype=jnp.float32)
    emb_im2 = jax.random.normal(keys[5], (num_entity2, dim2), dtype=jnp.float32)
    w2 = jax.random.normal(keys[6], (2, dim2), dtype=jnp.float32)
    idxs2 = jax.random.randint(keys[7], (300, 2), 0, num_entity2, dtype=jnp.int32)

    table2, w_row2 = build_complex_table(emb_re2, emb_im2, w2)
    out2 = jax.block_until_ready(
        complex_vector_forward(idxs2, table2, w_row2, tb=128, fused=True))
    ref2 = complex_vector_reference(idxs2, emb_re2, emb_im2, w2)
    assert out2.shape == ref2.shape == (300,)
    assert jnp.allclose(out2, ref2, atol=1e-3, rtol=1e-3), (out2, ref2)

    print("KERNEL_OK")
</pallas_src>

<mosaic_0001>
module attributes {stable_mosaic.version = 11 : i64} {
  func.func @_gathered_rows_kernel(%arg0: i32, %arg1: memref<128x48xf32, #tpu.memory_space<vmem>>, %arg2: memref<128x48xf32, #tpu.memory_space<vmem>>, %arg3: memref<1x48xf32, #tpu.memory_space<vmem>>, %arg4: memref<128x1xf32, #tpu.memory_space<vmem>>) attributes {dimension_semantics = [#tpu.dimension_semantics<parallel>], iteration_bounds = array<i64: 2>, scalar_prefetch = 0 : i64, scratch_operands = 0 : i64, tpu.core_type = #tpu.core_type<tc>, window_params = [{transform_indices = @transform_0, window_bounds = array<i64: 128, 48>}, {transform_indices = @transform_1, window_bounds = array<i64: 128, 48>}, {pipeline_mode = #tpu.pipeline_mode<synchronous>, transform_indices = @transform_2, window_bounds = array<i64: 1, 48>}, {transform_indices = @transform_3, window_bounds = array<i64: 128, 1>}]} {
    %c0 = arith.constant 0 : index
    %c0_0 = arith.constant 0 : index
    %0 = vector.load %arg1[%c0, %c0_0] : memref<128x48xf32, #tpu.memory_space<vmem>>, vector<128x48xf32>
    %c0_1 = arith.constant 0 : index
    %c0_2 = arith.constant 0 : index
    %1 = vector.load %arg2[%c0_1, %c0_2] : memref<128x48xf32, #tpu.memory_space<vmem>>, vector<128x48xf32>
    %c0_3 = arith.constant 0 : index
    %c0_4 = arith.constant 0 : index
    %2 = vector.load %arg3[%c0_3, %c0_4] : memref<1x48xf32, #tpu.memory_space<vmem>>, vector<1x48xf32>
    %3 = vector.extract_strided_slice %0 {offsets = [0, 0], sizes = [128, 24], strides = [1, 1]} : vector<128x48xf32> to vector<128x24xf32>
    %4 = vector.extract_strided_slice %0 {offsets = [0, 24], sizes = [128, 24], strides = [1, 1]} : vector<128x48xf32> to vector<128x24xf32>
    %5 = vector.extract_strided_slice %1 {offsets = [0, 0], sizes = [128, 24], strides = [1, 1]} : vector<128x48xf32> to vector<128x24xf32>
    %6 = vector.extract_strided_slice %1 {offsets = [0, 24], sizes = [128, 24], strides = [1, 1]} : vector<128x48xf32> to vector<128x24xf32>
    %7 = vector.extract_strided_slice %2 {offsets = [0, 0], sizes = [1, 24], strides = [1, 1]} : vector<1x48xf32> to vector<1x24xf32>
    %8 = vector.extract_strided_slice %2 {offsets = [0, 24], sizes = [1, 24], strides = [1, 1]} : vector<1x48xf32> to vector<1x24xf32>
    %9 = arith.mulf %3, %5 : vector<128x24xf32>
    %10 = arith.mulf %4, %6 : vector<128x24xf32>
    %11 = arith.addf %9, %10 : vector<128x24xf32>
    %12 = arith.mulf %3, %6 : vector<128x24xf32>
    %13 = arith.mulf %4, %5 : vector<128x24xf32>
    %14 = arith.subf %12, %13 : vector<128x24xf32>
    %15 = vector.broadcast %7 : vector<1x24xf32> to vector<128x24xf32>
    %16 = arith.mulf %11, %15 : vector<128x24xf32>
    %17 = vector.broadcast %8 : vector<1x24xf32> to vector<128x24xf32>
    %18 = arith.mulf %14, %17 : vector<128x24xf32>
    %19 = arith.addf %16, %18 : vector<128x24xf32>
    %cst = arith.constant dense<0.000000e+00> : vector<128xf32>
    %20 = vector.multi_reduction <add>, %19, %cst [1] : vector<128x24xf32> to vector<128xf32>
    %21 = vector.shape_cast %20 : vector<128xf32> to vector<128x1xf32>
    %c0_5 = arith.constant 0 : index
    %c0_6 = arith.constant 0 : index
    %22 = vector.load %arg4[%c0_5, %c0_6] : memref<128x1xf32, #tpu.memory_space<vmem>>, vector<128x1xf32>
    tpu.vector_store %arg4[%c0_5, %c0_6], %21 {strides = array<i32>} : memref<128x1xf32, #tpu.memory_space<vmem>>, vector<128x1xf32>,
    return
  }
  func.func @transform_0(%arg0: i32) -> (i32, i32) {
    %c0_i32 = arith.constant 0 : i32
    %c0_i32_0 = arith.constant 0 : i32
    return %arg0, %c0_i32 : i32, i32
  }
  func.func @transform_1(%arg0: i32) -> (i32, i32) {
    %c0_i32 = arith.constant 0 : i32
    %c0_i32_0 = arith.constant 0 : i32
    return %arg0, %c0_i32 : i32, i32
  }
  func.func @transform_2(%arg0: i32) -> (i32, i32) {
    %c0_i32 = arith.constant 0 : i32
    %c0_i32_0 = arith.constant 0 : i32
    %c0_i32_1 = arith.constant 0 : i32
    return %c0_i32, %c0_i32_0 : i32, i32
  }
  func.func @transform_3(%arg0: i32) -> (i32, i32) {
    %c0_i32 = arith.constant 0 : i32
    %c0_i32_0 = arith.constant 0 : i32
    return %arg0, %c0_i32 : i32, i32
  }
}

</mosaic_0001>

<llo_original>
// kernel: tpu_custom_call.1
$region0: #{tpu_custom_call.1}
  #allocation0 [shape = 'u32[]', space=smem, size = 0x4, offset = 0x4, fixed_abs, tag = 'smem constant byte address 0x4 - core index']
  #allocation1 [shape = 'u32[144,128]{1,0:T(1,128)}', space=vmem, size = 0x12000, scoped, tag = 'internal scratch']
  %s0 = inlined_call_operand.vmem [shape: f32[256,48], index: 0, kind: input, shape index: {}]
  %s1 = inlined_call_operand.vmem [shape: f32[256,48], index: 1, kind: input, shape index: {}]
  %s2 = inlined_call_operand.vmem [shape: f32[1,48], index: 2, kind: input, shape index: {}]
  %s3 = inlined_call_operand.vmem [shape: f32[256,1], index: 3, kind: output, shape index: {}]
  %s4 = sld [smem:[#allocation0]]
  $region45: #{tpu_custom_call.1} parent=0
    _
  %s6 = ssub.s32 1, %s4
  %s7 = scalar_select 0, %s6, %s4
  loop: start=0, step=1, limit=4
  $region2: #{tpu_custom_call.1} parent=0 // loop_pre_header
    _
  $region3: #{tpu_custom_call.1} parent=0 // loop_header
    %s9 = sphi 0, %s13
    %p10 = scmp.ge.s32.totalorder %s9, 4
    %s19 = sphi 0, %s21
    %s22 = sphi 0, %s19
    %s23 = sphi 0, %s22
    %s39 = sphi 0, %s23
    %s45 = sphi 0, %s47
    %s48 = sphi 0, %s45
    %s49 = sphi 0, %s48
    %s65 = sphi 0, %s49
    %s69 = sphi 0, %s69
    %s71 = sphi 0, %s69
    %s72 = sphi 0, %s71
    %s86 = sphi 0, %s72
    %s92 = sphi 0, %s94
    %s95 = sphi 0, %s92
    %s96 = sphi 0, %s95
    %s112 = sphi 0, %s96
  $region4: #{tpu_custom_call.1} parent=0 // loop_header_branch
    %12 = sbr.rel (%p10) target = $region8
  $region5: #{tpu_custom_call.1} parent=0 // loop_body
    %s14 = ssub.s32 %s9, 1
    %s15 = ssub.s32 %s9, 2
    %s16 = sadd.s32 %s9, 1
    %s17 = ssub.s32 %s9, %s16
    %p18 = scmp.eq.s32.totalorder %s17, 0
    %s20 = sadd.s32 %s19, 1
    %s21 = scalar_select %p18, %s19, %s20
    %p24 = pneg %p18
    %p25 = scmp.eq.s32.totalorder %s9, 1
    %p26 = por %p24, %p25
    %p27 = scmp.ne.s32.totalorder %s19, %s22
    %p28 = scmp.eq.s32.totalorder %s9, 0
    %p29 = por %p27, %p28
    %p30 = scmp.ne.s32.totalorder %s19, %s22
    %p31 = scmp.eq.s32.totalorder %s14, 1
    %p32 = por %p30, %p31
    %p33 = scmp.ne.s32.totalorder %s22, %s23
    %p34 = scmp.eq.s32.totalorder %s14, 0
    %p35 = por %p33, %p34
    %p36 = scmp.ne.s32.totalorder %s22, %s23
    %p37 = scmp.eq.s32.totalorder %s15, 1
    %p38 = por %p36, %p37
    %p40 = scmp.ne.s32.totalorder %s23, %s39
    %p41 = scmp.eq.s32.totalorder %s15, 0
    %p42 = por %p40, %p41
    %s43 = ssub.s32 %s9, %s16
    %p44 = scmp.eq.s32.totalorder %s43, 0
    %s46 = sadd.s32 %s45, 1
    %s47 = scalar_select %p44, %s45, %s46
    %p50 = pneg %p44
    %p51 = scmp.eq.s32.totalorder %s9, 1
    %p52 = por %p50, %p51
    %p53 = scmp.ne.s32.totalorder %s45, %s48
    %p54 = scmp.eq.s32.totalorder %s9, 0
    %p55 = por %p53, %p54
    %p56 = scmp.ne.s32.totalorder %s45, %s48
    %p57 = scmp.eq.s32.totalorder %s14, 1
    %p58 = por %p56, %p57
    %p59 = scmp.ne.s32.totalorder %s48, %s49
    %p60 = scmp.eq.s32.totalorder %s14, 0
    %p61 = por %p59, %p60
    %p62 = scmp.ne.s32.totalorder %s48, %s49
    %p63 = scmp.eq.s32.totalorder %s15, 1
    %p64 = por %p62, %p63
    %p66 = scmp.ne.s32.totalorder %s49, %s65
    %p67 = scmp.eq.s32.totalorder %s15, 0
    %p68 = por %p66, %p67
    %s70 = sadd.s32 %s69, 1
    %p73 = scmp.eq.s32.totalorder %s9, 1
    %p74 = scmp.ne.s32.totalorder %s69, %s71
    %p75 = scmp.eq.s32.totalorder %s9, 0
    %p76 = por %p74, %p75
    %p77 = scmp.ne.s32.totalorder %s69, %s71
    %p78 = scmp.eq.s32.totalorder %s14, 1
    %p79 = por %p77, %p78
    %p80 = scmp.ne.s32.totalorder %s71, %s72
    %p81 = scmp.eq.s32.totalorder %s14, 0
    %p82 = por %p80, %p81
    %p83 = scmp.ne.s32.totalorder %s71, %s72
    %p84 = scmp.eq.s32.totalorder %s15, 1
    %p85 = por %p83, %p84
    %p87 = scmp.ne.s32.totalorder %s72, %s86
    %p88 = scmp.eq.s32.totalorder %s15, 0
    %p89 = por %p87, %p88
    %s90 = ssub.s32 %s9, %s16
    %p91 = scmp.eq.s32.totalorder %s90, 0
    %s93 = sadd.s32 %s92, 1
    %s94 = scalar_select %p91, %s92, %s93
    %p97 = pneg %p91
    %p98 = scmp.eq.s32.totalorder %s9, 1
    %p99 = por %p97, %p98
    %p100 = scmp.ne.s32.totalorder %s92, %s95
    %p101 = scmp.eq.s32.totalorder %s9, 0
    %p102 = por %p100, %p101
    %p103 = scmp.ne.s32.totalorder %s92, %s95
    %p104 = scmp.eq.s32.totalorder %s14, 1
    %p105 = por %p103, %p104
    %p106 = scmp.ne.s32.totalorder %s95, %s96
    %p107 = scmp.eq.s32.totalorder %s14, 0
    %p108 = por %p106, %p107
    %p109 = scmp.ne.s32.totalorder %s95, %s96
    %p110 = scmp.eq.s32.totalorder %s15, 1
    %p111 = por %p109, %p110
    %p113 = scmp.ne.s32.totalorder %s96, %s112
    %p114 = scmp.eq.s32.totalorder %s15, 0
    %p115 = por %p113, %p114
    %p116 = scmp.le.s32.totalorder 1, %s9
    %p117 = scmp.lt.s32.totalorder %s9, 3
    %p118 = pnand %p116, %p117
    %p119 = pneg %p118
    // Predicated region
    $region9: #{tpu_custom_call.1} parent=5 // pred_check
      _
    $region10: #{tpu_custom_call.1} parent=5 // pred_check_branch
      %121 = sbr.rel (%p118) target = $region12
    $region11: #{tpu_custom_call.1} parent=5 // pred_region
      %s122 = ssub.s32 %s9, 1
      // Predicated region
      $region13: #{tpu_custom_call.1} parent=11 // pred_check
        %p123 = pneg %p82
      $region14: #{tpu_custom_call.1} parent=11 // pred_check_branch
        %125 = sbr.rel (%p123) target = $region16
      $region15: #{tpu_custom_call.1} parent=11 // pred_region
        _
      $region16: #{tpu_custom_call.1} parent=11 // pred_fallthru
        _
    $region12: #{tpu_custom_call.1} parent=5 // pred_fallthru
      _
    %p126 = scmp.lt.s32.totalorder %s9, 2
    // Predicated region
    $region17: #{tpu_custom_call.1} parent=5 // pred_check
      %p127 = pneg %p126
    $region18: #{tpu_custom_call.1} parent=5 // pred_check_branch
      %129 = sbr.rel (%p127) target = $region20
    $region19: #{tpu_custom_call.1} parent=5 // pred_region
      // Predicated region
      $region21: #{tpu_custom_call.1} parent=19 // pred_check
        %p130 = pneg %p29
      $region22: #{tpu_custom_call.1} parent=19 // pred_check_branch
        %132 = sbr.rel (%p130) target = $region24
      $region23: #{tpu_custom_call.1} parent=19 // pred_region
        %s133 = smul.u32 16, %s9
        %p134 = scmp.lt.s32.totalorder %s133, 31
        %s135 = scalar_select %p134, %s133, 31
        %s136 = smul.addr %s135, 8
        %s137 = scalar_lea.vmem %s0, %s136
        %s138 = smul.u32 16, %s9
      $region24: #{tpu_custom_call.1} parent=19 // pred_fallthru
        _
      // Predicated region
      $region25: #{tpu_custom_call.1} parent=19 // pred_check
        %p139 = pneg %p55
      $region26: #{tpu_custom_call.1} parent=19 // pred_check_branch
        %141 = sbr.rel (%p139) target = $region28
      $region27: #{tpu_custom_call.1} parent=19 // pred_region
        %s142 = smul.u32 16, %s9
        %p143 = scmp.lt.s32.totalorder %s142, 31
        %s144 = scalar_select %p143, %s142, 31
        %s145 = smul.addr %s144, 8
        %s146 = scalar_lea.vmem %s1, %s145
        %s147 = smul.u32 16, %s9
      $region28: #{tpu_custom_call.1} parent=19 // pred_fallthru
        _
    $region20: #{tpu_custom_call.1} parent=5 // pred_fallthru
      _
    %p148 = scmp.le.s32.totalorder 1, %s9
    %p149 = scmp.lt.s32.totalorder %s9, 3
    %p150 = pnand %p148, %p149
    %p151 = pneg %p150
    // Predicated region
    $region29: #{tpu_custom_call.1} parent=5 // pred_check
      _
    $region30: #{tpu_custom_call.1} parent=5 // pred_check_branch
      %153 = sbr.rel (%p150) target = $region32
    $region31: #{tpu_custom_call.1} parent=5 // pred_region
      %s154 = ssub.s32 %s9, 1
      %s155 = smul.u32 16, %s14
      %p156 = scmp.lt.s32.totalorder %s155, 31
      %s157 = scalar_select %p156, %s155, 31
      %s158 = smul.addr %s157, 8
      %s159 = scalar_lea.vmem %s0, %s158
      %p160 = pneg %p35
      %p161 = pneg %p32
      %s162 = smul.u32 16, %s14
      %p163 = scmp.lt.s32.totalorder %s162, 31
      %s164 = scalar_select %p163, %s162, 31
      %s165 = smul.addr %s164, 8
      %s166 = scalar_lea.vmem %s1, %s165
      %p167 = pneg %p61
      %p168 = pneg %p58
      %p169 = pneg %p82
      %p170 = pneg %p79
      %p171 = pneg %p108
      %p172 = pneg %p105
      %s173 = smul.u32 16, %s14
      %p174 = scmp.lt.s32.totalorder %s173, 31
      %s175 = scalar_select %p174, %s173, 31
      %s176 = smul.addr %s175, 8
      %s177 = scalar_lea.vmem %s3, %s176
      %s178 = smul.u32 16, %s14
      %p179 = scmp.lt.s32.totalorder %s178, 31
      %s180 = scalar_select %p179, %s178, 31
      %s181 = smul.addr %s180, 8
      %s182 = scalar_lea.vmem %s0, %s181
      %s183 = smul.u32 16, %s14
      %s184 = smul.u32 16, %s14
      %p185 = scmp.lt.s32.totalorder %s184, 31
      %s186 = scalar_select %p185, %s184, 31
      %s187 = smul.addr %s186, 8
      %s188 = scalar_lea.vmem %s1, %s187
      %s189 = smul.u32 16, %s14
      %s190 = smul.u32 16, %s14
      %p191 = scmp.lt.s32.totalorder %s190, 31
      %s192 = scalar_select %p191, %s190, 31
      %s193 = smul.addr %s192, 8
      %s194 = scalar_lea.vmem %s3, %s193
      %s195 = smul.u32 16, %s14
      %v196 = vld [vmem:[%s182] sm:$0xff]
      %v197 = vld [vmem:[%s182 + $0x8] sm:$0xff]
      %v198 = vld [vmem:[%s182 + $0x10] sm:$0xff]
      %v199 = vld [vmem:[%s182 + $0x18] sm:$0xff]
      %v200 = vld [vmem:[%s182 + $0x20] sm:$0xff]
      %v201 = vld [vmem:[%s182 + $0x28] sm:$0xff]
      %v202 = vld [vmem:[%s182 + $0x30] sm:$0xff]
      %v203 = vld [vmem:[%s182 + $0x38] sm:$0xff]
      %v204 = vld [vmem:[%s182 + $0x40] sm:$0xff]
      %v205 = vld [vmem:[%s182 + $0x48] sm:$0xff]
      %v206 = vld [vmem:[%s182 + $0x50] sm:$0xff]
      %v207 = vld [vmem:[%s182 + $0x58] sm:$0xff]
      %v208 = vld [vmem:[%s182 + $0x60] sm:$0xff]
      %v209 = vld [vmem:[%s182 + $0x68] sm:$0xff]
      %v210 = vld [vmem:[%s182 + $0x70] sm:$0xff]
      %v211 = vld [vmem:[%s182 + $0x78] sm:$0xff]
      %v212 = vld [vmem:[%s188] sm:$0xff]
      %v213 = vld [vmem:[%s188 + $0x8] sm:$0xff]
      %v214 = vld [vmem:[%s188 + $0x10] sm:$0xff]
      %v215 = vld [vmem:[%s188 + $0x18] sm:$0xff]
      %v216 = vld [vmem:[%s188 + $0x20] sm:$0xff]
      %v217 = vld [vmem:[%s188 + $0x28] sm:$0xff]
      %v218 = vld [vmem:[%s188 + $0x30] sm:$0xff]
      %v219 = vld [vmem:[%s188 + $0x38] sm:$0xff]
      %v220 = vld [vmem:[%s188 + $0x40] sm:$0xff]
      %v221 = vld [vmem:[%s188 + $0x48] sm:$0xff]
      %v222 = vld [vmem:[%s188 + $0x50] sm:$0xff]
      %v223 = vld [vmem:[%s188 + $0x58] sm:$0xff]
      %v224 = vld [vmem:[%s188 + $0x60] sm:$0xff]
      %v225 = vld [vmem:[%s188 + $0x68] sm:$0xff]
      %v226 = vld [vmem:[%s188 + $0x70] sm:$0xff]
      %v227 = vld [vmem:[%s188 + $0x78] sm:$0xff]
      %v228 = vld [vmem:[%s2] sm:$0x1]
      %v229 = vmul.f32 %v196, %v212
      %v230 = vmul.f32 %v197, %v213
      %v231 = vmul.f32 %v198, %v214
      %v232 = vmul.f32 %v199, %v215
      %v233 = vmul.f32 %v200, %v216
      %v234 = vmul.f32 %v201, %v217
      %v235 = vmul.f32 %v202, %v218
      %v236 = vmul.f32 %v203, %v219
      %v237 = vmul.f32 %v204, %v220
      %v238 = vmul.f32 %v205, %v221
      %v239 = vmul.f32 %v206, %v222
      %v240 = vmul.f32 %v207, %v223
      %v241 = vmul.f32 %v208, %v224
      %v242 = vmul.f32 %v209, %v225
      %v243 = vmul.f32 %v210, %v226
      %v244 = vmul.f32 %v211, %v227
      %261 = vrot.lane.b32.xlu0 %v229, 104
      %v262 = vpop.permute.xlu0 %261
      %263 = vrot.lane.b32.xlu0 %v230, 104
      %v264 = vpop.permute.xlu0 %263
      %265 = vrot.lane.b32.xlu0 %v231, 104
      %v266 = vpop.permute.xlu0 %265
      %267 = vrot.lane.b32.xlu0 %v232, 104
      %v268 = vpop.permute.xlu0 %267
      %269 = vrot.lane.b32.xlu0 %v233, 104
      %v270 = vpop.permute.xlu0 %269
      %271 = vrot.lane.b32.xlu0 %v234, 104
      %v272 = vpop.permute.xlu0 %271
      %273 = vrot.lane.b32.xlu0 %v235, 104
      %v274 = vpop.permute.xlu0 %273
      %275 = vrot.lane.b32.xlu0 %v236, 104
      %v276 = vpop.permute.xlu0 %275
      %277 = vrot.lane.b32.xlu0 %v237, 104
      %v278 = vpop.permute.xlu0 %277
      %279 = vrot.lane.b32.xlu0 %v238, 104
      %v280 = vpop.permute.xlu0 %279
      %281 = vrot.lane.b32.xlu0 %v239, 104
      %v282 = vpop.permute.xlu0 %281
      %283 = vrot.lane.b32.xlu0 %v240, 104
      %v284 = vpop.permute.xlu0 %283
      %285 = vrot.lane.b32.xlu0 %v241, 104
      %v286 = vpop.permute.xlu0 %285
      %287 = vrot.lane.b32.xlu0 %v242, 104
      %v288 = vpop.permute.xlu0 %287
      %289 = vrot.lane.b32.xlu0 %v243, 104
      %v290 = vpop.permute.xlu0 %289
      %291 = vrot.lane.b32.xlu0 %v244, 104
      %v292 = vpop.permute.xlu0 %291
      %v309 = vadd.f32 %v229, %v262
      %v310 = vadd.f32 %v230, %v264
      %v311 = vadd.f32 %v231, %v266
      %v312 = vadd.f32 %v232, %v268
      %v313 = vadd.f32 %v233, %v270
      %v314 = vadd.f32 %v234, %v272
      %v315 = vadd.f32 %v235, %v274
      %v316 = vadd.f32 %v236, %v276
      %v317 = vadd.f32 %v237, %v278
      %v318 = vadd.f32 %v238, %v280
      %v319 = vadd.f32 %v239, %v282
      %v320 = vadd.f32 %v240, %v284
      %v321 = vadd.f32 %v241, %v286
      %v322 = vadd.f32 %v242, %v288
      %v323 = vadd.f32 %v243, %v290
      %v324 = vadd.f32 %v244, %v292
      %341 = vrot.lane.b32.xlu0 %v212, 104
      %v342 = vpop.permute.xlu0 %341
      %343 = vrot.lane.b32.xlu0 %v213, 104
      %v344 = vpop.permute.xlu0 %343
      %345 = vrot.lane.b32.xlu0 %v214, 104
      %v346 = vpop.permute.xlu0 %345
      %347 = vrot.lane.b32.xlu0 %v215, 104
      %v348 = vpop.permute.xlu0 %347
      %349 = vrot.lane.b32.xlu0 %v216, 104
      %v350 = vpop.permute.xlu0 %349
      %351 = vrot.lane.b32.xlu0 %v217, 104
      %v352 = vpop.permute.xlu0 %351
      %353 = vrot.lane.b32.xlu0 %v218, 104
      %v354 = vpop.permute.xlu0 %353
      %355 = vrot.lane.b32.xlu0 %v219, 104
      %v356 = vpop.permute.xlu0 %355
      %357 = vrot.lane.b32.xlu0 %v220, 104
      %v358 = vpop.permute.xlu0 %357
      %359 = vrot.lane.b32.xlu0 %v221, 104
      %v360 = vpop.permute.xlu0 %359
      %361 = vrot.lane.b32.xlu0 %v222, 104
      %v362 = vpop.permute.xlu0 %361
      %363 = vrot.lane.b32.xlu0 %v223, 104
      %v364 = vpop.permute.xlu0 %363
      %365 = vrot.lane.b32.xlu0 %v224, 104
      %v366 = vpop.permute.xlu0 %365
      %367 = vrot.lane.b32.xlu0 %v225, 104
      %v368 = vpop.permute.xlu0 %367
      %369 = vrot.lane.b32.xlu0 %v226, 104
      %v370 = vpop.permute.xlu0 %369
      %371 = vrot.lane.b32.xlu0 %v227, 104
      %v372 = vpop.permute.xlu0 %371
      %v389 = vmul.f32 %v196, %v342
      %v390 = vmul.f32 %v197, %v344
      %v391 = vmul.f32 %v198, %v346
      %v392 = vmul.f32 %v199, %v348
      %v393 = vmul.f32 %v200, %v350
      %v394 = vmul.f32 %v201, %v352
      %v395 = vmul.f32 %v202, %v354
      %v396 = vmul.f32 %v203, %v356
      %v397 = vmul.f32 %v204, %v358
      %v398 = vmul.f32 %v205, %v360
      %v399 = vmul.f32 %v206, %v362
      %v400 = vmul.f32 %v207, %v364
      %v401 = vmul.f32 %v208, %v366
      %v402 = vmul.f32 %v209, %v368
      %v403 = vmul.f32 %v210, %v370
      %v404 = vmul.f32 %v211, %v372
      %405 = vrot.lane.b32.xlu0 %v212, 24
      %v406 = vpop.permute.xlu0 %405
      %407 = vrot.lane.b32.xlu0 %v213, 24
      %v408 = vpop.permute.xlu0 %407
      %409 = vrot.lane.b32.xlu0 %v214, 24
      %v410 = vpop.permute.xlu0 %409
      %411 = vrot.lane.b32.xlu0 %v215, 24
      %v412 = vpop.permute.xlu0 %411
      %413 = vrot.lane.b32.xlu0 %v216, 24
      %v414 = vpop.permute.xlu0 %413
      %415 = vrot.lane.b32.xlu0 %v217, 24
      %v416 = vpop.permute.xlu0 %415
      %417 = vrot.lane.b32.xlu0 %v218, 24
      %v418 = vpop.permute.xlu0 %417
      %419 = vrot.lane.b32.xlu0 %v219, 24
      %v420 = vpop.permute.xlu0 %419
      %421 = vrot.lane.b32.xlu0 %v220, 24
      %v422 = vpop.permute.xlu0 %421
      %423 = vrot.lane.b32.xlu0 %v221, 24
      %v424 = vpop.permute.xlu0 %423
      %425 = vrot.lane.b32.xlu0 %v222, 24
      %v426 = vpop.permute.xlu0 %425
      %427 = vrot.lane.b32.xlu0 %v223, 24
      %v428 = vpop.permute.xlu0 %427
      %429 = vrot.lane.b32.xlu0 %v224, 24
      %v430 = vpop.permute.xlu0 %429
      %431 = vrot.lane.b32.xlu0 %v225, 24
      %v432 = vpop.permute.xlu0 %431
      %433 = vrot.lane.b32.xlu0 %v226, 24
      %v434 = vpop.permute.xlu0 %433
      %435 = vrot.lane.b32.xlu0 %v227, 24
      %v436 = vpop.permute.xlu0 %435
      %v453 = vmul.f32 %v196, %v406
      %v454 = vmul.f32 %v197, %v408
      %v455 = vmul.f32 %v198, %v410
      %v456 = vmul.f32 %v199, %v412
      %v457 = vmul.f32 %v200, %v414
      %v458 = vmul.f32 %v201, %v416
      %v459 = vmul.f32 %v202, %v418
      %v460 = vmul.f32 %v203, %v420
      %v461 = vmul.f32 %v204, %v422
      %v462 = vmul.f32 %v205, %v424
      %v463 = vmul.f32 %v206, %v426
      %v464 = vmul.f32 %v207, %v428
      %v465 = vmul.f32 %v208, %v430
      %v466 = vmul.f32 %v209, %v432
      %v467 = vmul.f32 %v210, %v434
      %v468 = vmul.f32 %v211, %v436
      %485 = vrot.lane.b32.xlu0 %v453, 104
      %v486 = vpop.permute.xlu0 %485
      %487 = vrot.lane.b32.xlu0 %v454, 104
      %v488 = vpop.permute.xlu0 %487
      %489 = vrot.lane.b32.xlu0 %v455, 104
      %v490 = vpop.permute.xlu0 %489
      %491 = vrot.lane.b32.xlu0 %v456, 104
      %v492 = vpop.permute.xlu0 %491
      %493 = vrot.lane.b32.xlu0 %v457, 104
      %v494 = vpop.permute.xlu0 %493
      %495 = vrot.lane.b32.xlu0 %v458, 104
      %v496 = vpop.permute.xlu0 %495
      %497 = vrot.lane.b32.xlu0 %v459, 104
      %v498 = vpop.permute.xlu0 %497
      %499 = vrot.lane.b32.xlu0 %v460, 104
      %v500 = vpop.permute.xlu0 %499
      %501 = vrot.lane.b32.xlu0 %v461, 104
      %v502 = vpop.permute.xlu0 %501
      %503 = vrot.lane.b32.xlu0 %v462, 104
      %v504 = vpop.permute.xlu0 %503
      %505 = vrot.lane.b32.xlu0 %v463, 104
      %v506 = vpop.permute.xlu0 %505
      %507 = vrot.lane.b32.xlu0 %v464, 104
      %v508 = vpop.permute.xlu0 %507
      %509 = vrot.lane.b32.xlu0 %v465, 104
      %v510 = vpop.permute.xlu0 %509
      %511 = vrot.lane.b32.xlu0 %v466, 104
      %v512 = vpop.permute.xlu0 %511
      %513 = vrot.lane.b32.xlu0 %v467, 104
      %v514 = vpop.permute.xlu0 %513
      %515 = vrot.lane.b32.xlu0 %v468, 104
      %v516 = vpop.permute.xlu0 %515
      %v533 = vsub.f32 %v389, %v486
      %v534 = vsub.f32 %v390, %v488
      %v535 = vsub.f32 %v391, %v490
      %v536 = vsub.f32 %v392, %v492
      %v537 = vsub.f32 %v393, %v494
      %v538 = vsub.f32 %v394, %v496
      %v539 = vsub.f32 %v395, %v498
      %v540 = vsub.f32 %v396, %v500
      %v541 = vsub.f32 %v397, %v502
      %v542 = vsub.f32 %v398, %v504
      %v543 = vsub.f32 %v399, %v506
      %v544 = vsub.f32 %v400, %v508
      %v545 = vsub.f32 %v401, %v510
      %v546 = vsub.f32 %v402, %v512
      %v547 = vsub.f32 %v403, %v514
      %v548 = vsub.f32 %v404, %v516
      %v550 = vlaneseq
      %v551 = vshrl.u32 %v550, 7
      %v552 = vsub.s32 0, %v551
      %v553 = vrot.slane %v228, %v552
      %v555 = vmul.f32 %v309, %v553
      %v556 = vmul.f32 %v310, %v553
      %v557 = vmul.f32 %v311, %v553
      %v558 = vmul.f32 %v312, %v553
      %v559 = vmul.f32 %v313, %v553
      %v560 = vmul.f32 %v314, %v553
      %v561 = vmul.f32 %v315, %v553
      %v562 = vmul.f32 %v316, %v553
      %v563 = vmul.f32 %v317, %v553
      %v564 = vmul.f32 %v318, %v553
      %v565 = vmul.f32 %v319, %v553
      %v566 = vmul.f32 %v320, %v553
      %v567 = vmul.f32 %v321, %v553
      %v568 = vmul.f32 %v322, %v553
      %v569 = vmul.f32 %v323, %v553
      %v570 = vmul.f32 %v324, %v553
      %571 = vrot.lane.b32.xlu0 %v553, 104
      %v572 = vpop.permute.xlu0 %571
      %v574 = vmul.f32 %v533, %v572
      %v575 = vmul.f32 %v534, %v572
      %v576 = vmul.f32 %v535, %v572
      %v577 = vmul.f32 %v536, %v572
      %v578 = vmul.f32 %v537, %v572
      %v579 = vmul.f32 %v538, %v572
      %v580 = vmul.f32 %v539, %v572
      %v581 = vmul.f32 %v540, %v572
      %v582 = vmul.f32 %v541, %v572
      %v583 = vmul.f32 %v542, %v572
      %v584 = vmul.f32 %v543, %v572
      %v585 = vmul.f32 %v544, %v572
      %v586 = vmul.f32 %v545, %v572
      %v587 = vmul.f32 %v546, %v572
      %v588 = vmul.f32 %v547, %v572
      %v589 = vmul.f32 %v548, %v572
      %v590 = vadd.f32 %v555, %v574
      %v591 = vadd.f32 %v556, %v575
      %v592 = vadd.f32 %v557, %v576
      %v593 = vadd.f32 %v558, %v577
      %v594 = vadd.f32 %v559, %v578
      %v595 = vadd.f32 %v560, %v579
      %v596 = vadd.f32 %v561, %v580
      %v597 = vadd.f32 %v562, %v581
      %v598 = vadd.f32 %v563, %v582
      %v599 = vadd.f32 %v564, %v583
      %v600 = vadd.f32 %v565, %v584
      %v601 = vadd.f32 %v566, %v585
      %v602 = vadd.f32 %v567, %v586
      %v603 = vadd.f32 %v568, %v587
      %v604 = vadd.f32 %v569, %v588
      %v605 = vadd.f32 %v570, %v589
      %vm606 = vcmask 195584
      %v607 = vsel %vm606, %v590, 0.0
      %608 = vadd.xlane.f32.xlu0 %v607
      %v609 = vpop.xlane.xlu0 %608
      %v610 = vsel %vm606, %v591, 0.0
      %611 = vadd.xlane.f32.xlu0 %v610
      %v612 = vpop.xlane.xlu0 %611
      %v613 = vsel %vm606, %v592, 0.0
      %614 = vadd.xlane.f32.xlu0 %v613
      %v615 = vpop.xlane.xlu0 %614
      %v616 = vsel %vm606, %v593, 0.0
      %617 = vadd.xlane.f32.xlu0 %v616
      %v618 = vpop.xlane.xlu0 %617
      %v619 = vsel %vm606, %v594, 0.0
      %620 = vadd.xlane.f32.xlu0 %v619
      %v621 = vpop.xlane.xlu0 %620
      %v622 = vsel %vm606, %v595, 0.0
      %623 = vadd.xlane.f32.xlu0 %v622
      %v624 = vpop.xlane.xlu0 %623
      %v625 = vsel %vm606, %v596, 0.0
      %626 = vadd.xlane.f32.xlu0 %v625
      %v627 = vpop.xlane.xlu0 %626
      %v628 = vsel %vm606, %v597, 0.0
      %629 = vadd.xlane.f32.xlu0 %v628
      %v630 = vpop.xlane.xlu0 %629
      %v631 = vsel %vm606, %v598, 0.0
      %632 = vadd.xlane.f32.xlu0 %v631
      %v633 = vpop.xlane.xlu0 %632
      %v634 = vsel %vm606, %v599, 0.0
      %635 = vadd.xlane.f32.xlu0 %v634
      %v636 = vpop.xlane.xlu0 %635
      %v637 = vsel %vm606, %v600, 0.0
      %638 = vadd.xlane.f32.xlu0 %v637
      %v639 = vpop.xlane.xlu0 %638
      %v640 = vsel %vm606, %v601, 0.0
      %641 = vadd.xlane.f32.xlu0 %v640
      %v642 = vpop.xlane.xlu0 %641
      %v643 = vsel %vm606, %v602, 0.0
      %644 = vadd.xlane.f32.xlu0 %v643
      %v645 = vpop.xlane.xlu0 %644
      %v646 = vsel %vm606, %v603, 0.0
      %647 = vadd.xlane.f32.xlu0 %v646
      %v648 = vpop.xlane.xlu0 %647
      %v649 = vsel %vm606, %v604, 0.0
      %650 = vadd.xlane.f32.xlu0 %v649
      %v651 = vpop.xlane.xlu0 %650
      %v652 = vsel %vm606, %v605, 0.0
      %653 = vadd.xlane.f32.xlu0 %v652
      %v654 = vpop.xlane.xlu0 %653
      %vm655 = vcmask 7168
      %656 = vst.msk [vmem:[%s194] sm:$0xff] %vm655, %v609
      %657 = vst.msk [vmem:[%s194 + $0x8] sm:$0xff] %vm655, %v612
      %658 = vst.msk [vmem:[%s194 + $0x10] sm:$0xff] %vm655, %v615
      %659 = vst.msk [vmem:[%s194 + $0x18] sm:$0xff] %vm655, %v618
      %660 = vst.msk [vmem:[%s194 + $0x20] sm:$0xff] %vm655, %v621
      %661 = vst.msk [vmem:[%s194 + $0x28] sm:$0xff] %vm655, %v624
      %662 = vst.msk [vmem:[%s194 + $0x30] sm:$0xff] %vm655, %v627
      %663 = vst.msk [vmem:[%s194 + $0x38] sm:$0xff] %vm655, %v630
      %664 = vst.msk [vmem:[%s194 + $0x40] sm:$0xff] %vm655, %v633
      %665 = vst.msk [vmem:[%s194 + $0x48] sm:$0xff] %vm655, %v636
      %666 = vst.msk [vmem:[%s194 + $0x50] sm:$0xff] %vm655, %v639
      %667 = vst.msk [vmem:[%s194 + $0x58] sm:$0xff] %vm655, %v642
      %668 = vst.msk [vmem:[%s194 + $0x60] sm:$0xff] %vm655, %v645
      %669 = vst.msk [vmem:[%s194 + $0x68] sm:$0xff] %vm655, %v648
      %670 = vst.msk [vmem:[%s194 + $0x70] sm:$0xff] %vm655, %v651
      %671 = vst.msk [vmem:[%s194 + $0x78] sm:$0xff] %vm655, %v654
      %s672 = smul.u32 16, %s14
      %p673 = scmp.lt.s32.totalorder %s672, 31
      %s674 = scalar_select %p673, %s672, 31
      %s675 = smul.addr %s674, 8
      %s676 = scalar_lea.vmem %s3, %s675
      // Predicated region
      $region33: #{tpu_custom_call.1} parent=31 // pred_check
        %p677 = pneg %p105
      $region34: #{tpu_custom_call.1} parent=31 // pred_check_branch
        %679 = sbr.rel (%p677) target = $region36
      $region35: #{tpu_custom_call.1} parent=31 // pred_region
        %s680 = smul.u32 16, %s14
      $region36: #{tpu_custom_call.1} parent=31 // pred_fallthru
        _
    $region32: #{tpu_custom_call.1} parent=5 // pred_fallthru
      _
    %p681 = scmp.le.s32.totalorder 2, %s9
    // Predicated region
    $region37: #{tpu_custom_call.1} parent=5 // pred_check
      %p682 = pneg %p681
    $region38: #{tpu_custom_call.1} parent=5 // pred_check_branch
      %684 = sbr.rel (%p682) target = $region40
    $region39: #{tpu_custom_call.1} parent=5 // pred_region
      %s685 = ssub.s32 %s9, 2
      // Predicated region
      $region41: #{tpu_custom_call.1} parent=39 // pred_check
        %p686 = pneg %p111
      $region42: #{tpu_custom_call.1} parent=39 // pred_check_branch
        %688 = sbr.rel (%p686) target = $region44
      $region43: #{tpu_custom_call.1} parent=39 // pred_region
        %s689 = smul.u32 16, %s15
        %p690 = scmp.lt.s32.totalorder %s689, 31
        %s691 = scalar_select %p690, %s689, 31
        %s692 = smul.addr %s691, 8
        %s693 = scalar_lea.vmem %s3, %s692
      $region44: #{tpu_custom_call.1} parent=39 // pred_fallthru
        _
    $region40: #{tpu_custom_call.1} parent=5 // pred_fallthru
      _
  $region6: #{tpu_custom_call.1} parent=0 // loop_footer
    %s13 = sadd.s32 1, %s9
  $region7: #{tpu_custom_call.1} parent=0 // loop_footer_branch
    %8 = sbr.rel target = $region3
  $region8: #{tpu_custom_call.1} parent=0 // loop_exit
    _

</llo_original>
